<compile_context>
chip_gen: v5e
topology: v5e:2x2
jax: 0.10.0
libtpu: 0.0.40
codegen_flags: <defaults>
</compile_context>

<pallas_src>
import functools

import jax
import jax.numpy as jnp
from jax.experimental import pallas as pl
from jax.experimental.pallas import tpu as pltpu

F_IN = 784        # 1*28*28 flattened
F_OUT = 20        # fc1 out_features
F_OUT_PAD = 32    # padded logit width (full-array last dim -> legal BlockSpec)


def fcnet_kernel(x_ref, w1_ref, b1_ref, mask_ref, out_ref):
    # x_ref   : (TB, 784)  f32   streamed; cast to bf16 here (one HBM pass over x)
    # w1_ref  : (784, 32)  bf16  resident; cols >= 20 are zero
    # b1_ref  : (1, 32)    f32   resident; cols >= 20 are zero
    # mask_ref: (1, 32)    f32   resident; 0.0 for cols < 20, -inf otherwise
    # out_ref : (TB, 32)   f32
    x = x_ref[...].astype(jnp.bfloat16)
    h = jnp.dot(x, w1_ref[...], preferred_element_type=jnp.float32)
    h = h + b1_ref[...]

    # relu; dropout1 is identity in eval mode; the second relu is idempotent.
    h = jnp.maximum(h, 0.0)
    # TODO(synk): training-mode dropout would use pltpu.prng_seed +
    # pltpu.stateful_bernoulli; not needed for the eval/forward pass.

    # Additive -inf mask on padded logit columns (cheaper than iota+compare+select).
    h = h + mask_ref[...]

    # Numerically-stable log_softmax over the feature axis (dim=1);
    # exp(-inf) = 0 so padded columns do not contribute.
    m = jnp.max(h, axis=-1, keepdims=True)
    lse = jnp.log(jnp.sum(jnp.exp(h - m), axis=-1, keepdims=True)) + m
    out_ref[...] = (h - lse).astype(out_ref.dtype)


def prepare_params(w1, b1):
    """One-time weight prep: y = x @ W1^T + b1, zero-padded to F_OUT_PAD cols."""
    w1_t = jnp.zeros((F_IN, F_OUT_PAD), jnp.bfloat16)
    w1_t = w1_t.at[:, :F_OUT].set(w1.T.astype(jnp.bfloat16))
    b1_row = jnp.zeros((1, F_OUT_PAD), jnp.float32)
    b1_row = b1_row.at[:, :F_OUT].set(b1.astype(jnp.float32))
    mask_row = jnp.where(
        jnp.arange(F_OUT_PAD)[None, :] < F_OUT, 0.0, -jnp.inf
    ).astype(jnp.float32)
    return w1_t, b1_row, mask_row


def _round_up(n, m):
    return ((n + m - 1) // m) * m


@functools.partial(jax.jit, static_argnames=("tb",))
def fcnet_forward(x_nchw, w1_t, b1_row, mask_row, *, tb=4096):
    """x_nchw: (B, 1, 28, 28) float32. Returns (B, 20) log-probabilities (f32)."""
    B = x_nchw.shape[0]
    # flatten(start_dim=1): free contiguous reshape; x stays f32 (cast in-kernel).
    x_flat = x_nchw.reshape(B, F_IN)

    # Pad the batch only up to the 8-sublane granule (not to a TB multiple).
    B_pad = _round_up(B, 8)
    if B_pad != B:
        x_flat = jnp.pad(x_flat, ((0, B_pad - B), (0, 0)))

    # Batch tile: cap so the grid has >= 2 steps when possible, so the
    # "parallel" axis shards across both TensorCores on v7x (no-op on v5e/v6e).
    tb_cap = _round_up(pl.cdiv(B_pad, 2), 8) if B_pad > 8 else B_pad
    TB = max(8, min(tb, tb_cap))
    grid = (pl.cdiv(B_pad, TB),)

    flops = 2 * B_pad * F_IN * F_OUT_PAD + 8 * B_pad * F_OUT_PAD
    bytes_accessed = (B_pad * F_IN * 4 + B_pad * F_OUT_PAD * 4
                      + F_IN * F_OUT_PAD * 2 + 2 * F_OUT_PAD * 4)

    out_pad = pl.pallas_call(
        fcnet_kernel,
        out_shape=jax.ShapeDtypeStruct((B_pad, F_OUT_PAD), jnp.float32),
        grid_spec=pltpu.PrefetchScalarGridSpec(
            num_scalar_prefetch=0,
            grid=grid,
            in_specs=[
                pl.BlockSpec((TB, F_IN), lambda i: (i, 0)),           # streamed x
                pl.BlockSpec((F_IN, F_OUT_PAD), lambda i: (0, 0)),    # resident W
                pl.BlockSpec((1, F_OUT_PAD), lambda i: (0, 0)),       # resident b
                pl.BlockSpec((1, F_OUT_PAD), lambda i: (0, 0)),       # resident mask
            ],
            out_specs=pl.BlockSpec((TB, F_OUT_PAD), lambda i: (i, 0)),
        ),
        compiler_params=pltpu.CompilerParams(
            dimension_semantics=("parallel",),      # megacore sharding on v7x
            vmem_limit_bytes=48 << 20,              # TB=4096 budget fits all gens
        ),
        cost_estimate=pl.CostEstimate(
            flops=flops,
            transcendentals=B_pad * F_OUT_PAD + B_pad,
            bytes_accessed=bytes_accessed,
        ),
    )(x_flat, w1_t, b1_row, mask_row)

    # Drop batch padding and the padded logit columns.
    return out_pad[:B, :F_OUT]


def init_params(key):
    """Deterministic init mirroring nn.Linear default (uniform +/- 1/sqrt(fan_in))."""
    k1, k2, k3, k4 = jax.random.split(key, 4)
    bound1 = 1.0 / jnp.sqrt(784.0)
    w1 = jax.random.uniform(k1, (20, 784), jnp.float32, -bound1, bound1)
    b1 = jax.random.uniform(k2, (20,), jnp.float32, -bound1, bound1)
    # fc2 exists in __init__ but is unused in forward(); created for fidelity.
    bound2 = 1.0 / jnp.sqrt(20.0)
    w2 = jax.random.uniform(k3, (10, 20), jnp.float32, -bound2, bound2)
    b2 = jax.random.uniform(k4, (10,), jnp.float32, -bound2, bound2)
    return w1, b1, w2, b2


if __name__ == "__main__":
    key = jax.random.PRNGKey(0)
    kx, kp = jax.random.split(key)

    # MNIST-like input: batch=2, NCHW (2, 1, 28, 28)
    x = jax.random.normal(kx, (2, 1, 28, 28), jnp.float32)
    w1, b1, w2, b2 = init_params(kp)

    w1_t, b1_row, mask_row = prepare_params(w1, b1)
    out = fcnet_forward(x, w1_t, b1_row, mask_row)
    out = jax.block_until_ready(out)

    # sanity: rows of log_softmax exponentiate+sum to 1 and are finite
    row_sums = jnp.sum(jnp.exp(out), axis=1)
    assert out.shape == (2, 20)
    assert bool(jnp.all(jnp.abs(row_sums - 1.0) < 1e-4))
    assert bool(jnp.all(jnp.isfinite(out)))

    # pure-JAX f32 reference (loose tolerance: bf16 MXU inputs)
    x_ref_flat = x.reshape(2, -1)
    ref = jax.nn.log_softmax(jnp.maximum(x_ref_flat @ w1.T + b1, 0.0), axis=-1)
    assert bool(jnp.max(jnp.abs(out - ref)) < 5e-2)

    print("KERNEL_OK")
</pallas_src>

<mosaic_0001>
module attributes {stable_mosaic.version = 11 : i64} {
  func.func @fcnet_kernel(%arg0: i32, %arg1: memref<8x784xf32, #tpu.memory_space<vmem>>, %arg2: memref<784x32xbf16, #tpu.memory_space<vmem>>, %arg3: memref<1x32xf32, #tpu.memory_space<vmem>>, %arg4: memref<1x32xf32, #tpu.memory_space<vmem>>, %arg5: memref<8x32xf32, #tpu.memory_space<vmem>>) attributes {dimension_semantics = [#tpu.dimension_semantics<parallel>], iteration_bounds = array<i64: 1>, scalar_prefetch = 0 : i64, scratch_operands = 0 : i64, tpu.core_type = #tpu.core_type<tc>, window_params = [{transform_indices = @transform_0, window_bounds = array<i64: 8, 784>}, {pipeline_mode = #tpu.pipeline_mode<synchronous>, transform_indices = @transform_1, window_bounds = array<i64: 784, 32>}, {pipeline_mode = #tpu.pipeline_mode<synchronous>, transform_indices = @transform_2, window_bounds = array<i64: 1, 32>}, {pipeline_mode = #tpu.pipeline_mode<synchronous>, transform_indices = @transform_3, window_bounds = array<i64: 1, 32>}, {transform_indices = @transform_4, window_bounds = array<i64: 8, 32>}]} {
    %c0 = arith.constant 0 : index
    %c0_0 = arith.constant 0 : index
    %0 = vector.load %arg1[%c0, %c0_0] : memref<8x784xf32, #tpu.memory_space<vmem>>, vector<8x784xf32>
    %1 = arith.truncf %0 : vector<8x784xf32> to vector<8x784xbf16>
    %c0_1 = arith.constant 0 : index
    %c0_2 = arith.constant 0 : index
    %2 = vector.load %arg2[%c0_1, %c0_2] : memref<784x32xbf16, #tpu.memory_space<vmem>>, vector<784x32xbf16>
    %cst = arith.constant dense<0.000000e+00> : vector<8x32xf32>
    %3 = tpu.matmul %1, %2, %cst {dimension_numbers = #tpu.dot_dimension_numbers<[1], [0], [0], [1], [0, 0, 1, 1], [], []>} : vector<8x784xbf16>, vector<784x32xbf16>, vector<8x32xf32> -> vector<8x32xf32>
    %c0_3 = arith.constant 0 : index
    %c0_4 = arith.constant 0 : index
    %4 = vector.load %arg3[%c0_3, %c0_4] : memref<1x32xf32, #tpu.memory_space<vmem>>, vector<1x32xf32>
    %5 = vector.broadcast %4 : vector<1x32xf32> to vector<8x32xf32>
    %6 = arith.addf %3, %5 : vector<8x32xf32>
    %cst_5 = arith.constant 0.000000e+00 : f32
    %7 = vector.broadcast %cst_5 : f32 to vector<8x32xf32>
    %8 = arith.maximumf %6, %7 : vector<8x32xf32>
    %c0_6 = arith.constant 0 : index
    %c0_7 = arith.constant 0 : index
    %9 = vector.load %arg4[%c0_6, %c0_7] : memref<1x32xf32, #tpu.memory_space<vmem>>, vector<1x32xf32>
    %10 = vector.broadcast %9 : vector<1x32xf32> to vector<8x32xf32>
    %11 = arith.addf %8, %10 : vector<8x32xf32>
    %cst_8 = arith.constant dense<0xFF800000> : vector<8xf32>
    %12 = vector.multi_reduction <maximumf>, %11, %cst_8 [1] : vector<8x32xf32> to vector<8xf32>
    %13 = vector.shape_cast %12 : vector<8xf32> to vector<8x1xf32>
    %14 = vector.broadcast %13 : vector<8x1xf32> to vector<8x32xf32>
    %15 = arith.subf %11, %14 : vector<8x32xf32>
    %16 = math.exp %15 : vector<8x32xf32>
    %cst_9 = arith.constant dense<0.000000e+00> : vector<8xf32>
    %17 = vector.multi_reduction <add>, %16, %cst_9 [1] : vector<8x32xf32> to vector<8xf32>
    %18 = vector.shape_cast %17 : vector<8xf32> to vector<8x1xf32>
    %19 = math.log %18 : vector<8x1xf32>
    %20 = arith.addf %19, %13 : vector<8x1xf32>
    %21 = vector.broadcast %20 : vector<8x1xf32> to vector<8x32xf32>
    %22 = arith.subf %11, %21 : vector<8x32xf32>
    %c0_10 = arith.constant 0 : index
    %c0_11 = arith.constant 0 : index
    %23 = vector.load %arg5[%c0_10, %c0_11] : memref<8x32xf32, #tpu.memory_space<vmem>>, vector<8x32xf32>
    tpu.vector_store %arg5[%c0_10, %c0_11], %22 {strides = array<i32>} : memref<8x32xf32, #tpu.memory_space<vmem>>, vector<8x32xf32>,
    return
  }
  func.func @transform_0(%arg0: i32) -> (i32, i32) {
    %c0_i32 = arith.constant 0 : i32
    %c0_i32_0 = arith.constant 0 : i32
    return %arg0, %c0_i32 : i32, i32
  }
  func.func @transform_1(%arg0: i32) -> (i32, i32) {
    %c0_i32 = arith.constant 0 : i32
    %c0_i32_0 = arith.constant 0 : i32
    %c0_i32_1 = arith.constant 0 : i32
    return %c0_i32, %c0_i32_0 : i32, i32
  }
  func.func @transform_2(%arg0: i32) -> (i32, i32) {
    %c0_i32 = arith.constant 0 : i32
    %c0_i32_0 = arith.constant 0 : i32
    %c0_i32_1 = arith.constant 0 : i32
    return %c0_i32, %c0_i32_0 : i32, i32
  }
  func.func @transform_3(%arg0: i32) -> (i32, i32) {
    %c0_i32 = arith.constant 0 : i32
    %c0_i32_0 = arith.constant 0 : i32
    %c0_i32_1 = arith.constant 0 : i32
    return %c0_i32, %c0_i32_0 : i32, i32
  }
  func.func @transform_4(%arg0: i32) -> (i32, i32) {
    %c0_i32 = arith.constant 0 : i32
    %c0_i32_0 = arith.constant 0 : i32
    return %arg0, %c0_i32 : i32, i32
  }
}

</mosaic_0001>

<llo_original>
// kernel: fcnet_forward.1
$region0: #{fcnet_forward.1}
  #allocation0 [shape = 'u32[]', space=smem, size = 0x4, offset = 0x4, fixed_abs, tag = 'smem constant byte address 0x4 - core index']
  #allocation1 [shape = 'u32[72,128]{1,0:T(1,128)}', space=vmem, size = 0x9000, scoped, tag = 'internal scratch']
  %s0 = inlined_call_operand.vmem [shape: f32[8,784], index: 0, kind: input, shape index: {}]
  %s1 = inlined_call_operand.vmem [shape: bf16[784,32], index: 1, kind: input, shape index: {}]
  %s2 = inlined_call_operand.vmem [shape: f32[1,32], index: 2, kind: input, shape index: {}]
  %s3 = inlined_call_operand.vmem [shape: f32[1,32], index: 3, kind: input, shape index: {}]
  %s4 = inlined_call_operand.vmem [shape: f32[8,32], index: 4, kind: output, shape index: {}]
  %s5 = sld [smem:[#allocation0]]
  $region26: #{fcnet_forward.1} parent=0
    _
  %s7 = ssub.s32 1, %s5
  %s8 = scalar_select 0, %s7, %s5
  // Predicated region
  $region2: #{fcnet_forward.1} parent=0 // pred_check
    _
  $region3: #{fcnet_forward.1} parent=0 // pred_check_branch
    %10 = sbr.rel (0) target = $region5
  $region4: #{fcnet_forward.1} parent=0 // pred_region
    _
  $region5: #{fcnet_forward.1} parent=0 // pred_fallthru
    _
  // Predicated region
  $region6: #{fcnet_forward.1} parent=0 // pred_check
    _
  $region7: #{fcnet_forward.1} parent=0 // pred_check_branch
    %12 = sbr.rel (0) target = $region9
  $region8: #{fcnet_forward.1} parent=0 // pred_region
    _
  $region9: #{fcnet_forward.1} parent=0 // pred_fallthru
    _
  // Predicated region
  $region10: #{fcnet_forward.1} parent=0 // pred_check
    _
  $region11: #{fcnet_forward.1} parent=0 // pred_check_branch
    %14 = sbr.rel (0) target = $region13
  $region12: #{fcnet_forward.1} parent=0 // pred_region
    _
  $region13: #{fcnet_forward.1} parent=0 // pred_fallthru
    _
  // Predicated region
  $region14: #{fcnet_forward.1} parent=0 // pred_check
    _
  $region15: #{fcnet_forward.1} parent=0 // pred_check_branch
    %16 = sbr.rel (0) target = $region17
  $region16: #{fcnet_forward.1} parent=0 // pred_region
    _
  $region17: #{fcnet_forward.1} parent=0 // pred_fallthru
    _
  %v18 = vld [vmem:[%s0] sm:$0xff]
  %v19 = vld [vmem:[%s0 + $0x8] sm:$0xff]
  %v20 = vld [vmem:[%s0 + $0x10] sm:$0xff]
  %v21 = vld [vmem:[%s0 + $0x18] sm:$0xff]
  %v22 = vld [vmem:[%s0 + $0x20] sm:$0xff]
  %v23 = vld [vmem:[%s0 + $0x28] sm:$0xff]
  %v24 = vld [vmem:[%s0 + $0x30] sm:$0xff]
  %v25 = vpack.c.bf16 %v18, %v18
  %v26 = vpack.c.bf16 %v19, %v19
  %v27 = vpack.c.bf16 %v20, %v20
  %v28 = vpack.c.bf16 %v21, %v21
  %v29 = vpack.c.bf16 %v22, %v22
  %v30 = vpack.c.bf16 %v23, %v23
  %v31 = vpack.c.bf16 %v24, %v24
  %v32 = vld [vmem:[%s1] sm:$0xf]
  %v33 = vld [vmem:[%s1 + $0x4] sm:$0xf]
  %v34 = vld [vmem:[%s1 + $0x8] sm:$0xf]
  %v35 = vld [vmem:[%s1 + $0xc] sm:$0xf]
  %v36 = vld [vmem:[%s1 + $0x10] sm:$0xf]
  %v37 = vld [vmem:[%s1 + $0x14] sm:$0xf]
  %v38 = vld [vmem:[%s1 + $0x18] sm:$0xf]
  %v39 = vld [vmem:[%s1 + $0x1c] sm:$0xf]
  %v40 = vld [vmem:[%s1 + $0x20] sm:$0xf]
  %v41 = vld [vmem:[%s1 + $0x24] sm:$0xf]
  %v42 = vld [vmem:[%s1 + $0x28] sm:$0xf]
  %v43 = vld [vmem:[%s1 + $0x2c] sm:$0xf]
  %v44 = vld [vmem:[%s1 + $0x30] sm:$0xf]
  %v45 = vld [vmem:[%s1 + $0x34] sm:$0xf]
  %v46 = vld [vmem:[%s1 + $0x38] sm:$0xf]
  %v47 = vld [vmem:[%s1 + $0x3c] sm:$0xf]
  %v48 = vld [vmem:[%s1 + $0x40] sm:$0xf]
  %v49 = vld [vmem:[%s1 + $0x44] sm:$0xf]
  %v50 = vld [vmem:[%s1 + $0x48] sm:$0xf]
  %v51 = vld [vmem:[%s1 + $0x4c] sm:$0xf]
  %v52 = vld [vmem:[%s1 + $0x50] sm:$0xf]
  %v53 = vld [vmem:[%s1 + $0x54] sm:$0xf]
  %v54 = vld [vmem:[%s1 + $0x58] sm:$0xf]
  %v55 = vld [vmem:[%s1 + $0x5c] sm:$0xf]
  %v56 = vld [vmem:[%s1 + $0x60] sm:$0xf]
  %v57 = vld [vmem:[%s1 + $0x64] sm:$0xf]
  %v58 = vld [vmem:[%s1 + $0x68] sm:$0xf]
  %v59 = vld [vmem:[%s1 + $0x6c] sm:$0xf]
  %v60 = vld [vmem:[%s1 + $0x70] sm:$0xf]
  %v61 = vld [vmem:[%s1 + $0x74] sm:$0xf]
  %v62 = vld [vmem:[%s1 + $0x78] sm:$0xf]
  %v63 = vld [vmem:[%s1 + $0x7c] sm:$0xf]
  %v64 = vld [vmem:[%s1 + $0x80] sm:$0xf]
  %v65 = vld [vmem:[%s1 + $0x84] sm:$0xf]
  %v66 = vld [vmem:[%s1 + $0x88] sm:$0xf]
  %v67 = vld [vmem:[%s1 + $0x8c] sm:$0xf]
  %v68 = vld [vmem:[%s1 + $0x90] sm:$0xf]
  %v69 = vld [vmem:[%s1 + $0x94] sm:$0xf]
  %v70 = vld [vmem:[%s1 + $0x98] sm:$0xf]
  %v71 = vld [vmem:[%s1 + $0x9c] sm:$0xf]
  %v72 = vld [vmem:[%s1 + $0xa0] sm:$0xf]
  %v73 = vld [vmem:[%s1 + $0xa4] sm:$0xf]
  %v74 = vld [vmem:[%s1 + $0xa8] sm:$0xf]
  %v75 = vld [vmem:[%s1 + $0xac] sm:$0xf]
  %v76 = vld [vmem:[%s1 + $0xb0] sm:$0xf]
  %v77 = vld [vmem:[%s1 + $0xb4] sm:$0xf]
  %v78 = vld [vmem:[%s1 + $0xb8] sm:$0xf]
  %v79 = vld [vmem:[%s1 + $0xbc] sm:$0xf]
  %v80 = vld [vmem:[%s1 + $0xc0] sm:$0xf]
  %v81 = vld [vmem:[%s1 + $0xc4] sm:$0xf]
  %v82 = vld [vmem:[%s1 + $0xc8] sm:$0xf]
  %v83 = vld [vmem:[%s1 + $0xcc] sm:$0xf]
  %v84 = vld [vmem:[%s1 + $0xd0] sm:$0xf]
  %v85 = vld [vmem:[%s1 + $0xd4] sm:$0xf]
  %v86 = vld [vmem:[%s1 + $0xd8] sm:$0xf]
  %v87 = vld [vmem:[%s1 + $0xdc] sm:$0xf]
  %v88 = vld [vmem:[%s1 + $0xe0] sm:$0xf]
  %v89 = vld [vmem:[%s1 + $0xe4] sm:$0xf]
  %v90 = vld [vmem:[%s1 + $0xe8] sm:$0xf]
  %v91 = vld [vmem:[%s1 + $0xec] sm:$0xf]
  %v92 = vld [vmem:[%s1 + $0xf0] sm:$0xf]
  %v93 = vld [vmem:[%s1 + $0xf4] sm:$0xf]
  %v94 = vld [vmem:[%s1 + $0xf8] sm:$0xf]
  %v95 = vld [vmem:[%s1 + $0xfc] sm:$0xf]
  %v96 = vld [vmem:[%s1 + $0x100] sm:$0xf]
  %v97 = vld [vmem:[%s1 + $0x104] sm:$0xf]
  %v98 = vld [vmem:[%s1 + $0x108] sm:$0xf]
  %v99 = vld [vmem:[%s1 + $0x10c] sm:$0xf]
  %v100 = vld [vmem:[%s1 + $0x110] sm:$0xf]
  %v101 = vld [vmem:[%s1 + $0x114] sm:$0xf]
  %v102 = vld [vmem:[%s1 + $0x118] sm:$0xf]
  %v103 = vld [vmem:[%s1 + $0x11c] sm:$0xf]
  %v104 = vld [vmem:[%s1 + $0x120] sm:$0xf]
  %v105 = vld [vmem:[%s1 + $0x124] sm:$0xf]
  %v106 = vld [vmem:[%s1 + $0x128] sm:$0xf]
  %v107 = vld [vmem:[%s1 + $0x12c] sm:$0xf]
  %v108 = vld [vmem:[%s1 + $0x130] sm:$0xf]
  %v109 = vld [vmem:[%s1 + $0x134] sm:$0xf]
  %v110 = vld [vmem:[%s1 + $0x138] sm:$0xf]
  %v111 = vld [vmem:[%s1 + $0x13c] sm:$0xf]
  %v112 = vld [vmem:[%s1 + $0x140] sm:$0xf]
  %v113 = vld [vmem:[%s1 + $0x144] sm:$0xf]
  %v114 = vld [vmem:[%s1 + $0x148] sm:$0xf]
  %v115 = vld [vmem:[%s1 + $0x14c] sm:$0xf]
  %v116 = vld [vmem:[%s1 + $0x150] sm:$0xf]
  %v117 = vld [vmem:[%s1 + $0x154] sm:$0xf]
  %v118 = vld [vmem:[%s1 + $0x158] sm:$0xf]
  %v119 = vld [vmem:[%s1 + $0x15c] sm:$0xf]
  %v120 = vld [vmem:[%s1 + $0x160] sm:$0xf]
  %v121 = vld [vmem:[%s1 + $0x164] sm:$0xf]
  %v122 = vld [vmem:[%s1 + $0x168] sm:$0xf]
  %v123 = vld [vmem:[%s1 + $0x16c] sm:$0xf]
  %v124 = vld [vmem:[%s1 + $0x170] sm:$0xf]
  %v125 = vld [vmem:[%s1 + $0x174] sm:$0xf]
  %v126 = vld [vmem:[%s1 + $0x178] sm:$0xf]
  %v127 = vld [vmem:[%s1 + $0x17c] sm:$0xf]
  %v128 = vld [vmem:[%s1 + $0x180] sm:$0xf]
  %v129 = vld [vmem:[%s1 + $0x184] sm:$0xf]
  %v130 = vld [vmem:[%s2] sm:$0x1]
  %v132 = vperm.slane %v130, 0
  %v232 = vunpack.c.l.b16 %v32
  %v233 = vunpack.c.l.b16 %v33
  %v234 = vunpack.c.l.b16 %v34
  %v235 = vunpack.c.l.b16 %v35
  %v236 = vunpack.c.l.b16 %v36
  %v237 = vunpack.c.l.b16 %v37
  %v238 = vunpack.c.l.b16 %v38
  %v239 = vunpack.c.l.b16 %v39
  %v240 = vunpack.c.l.b16 %v40
  %v241 = vunpack.c.l.b16 %v41
  %v242 = vunpack.c.l.b16 %v42
  %v243 = vunpack.c.l.b16 %v43
  %v244 = vunpack.c.l.b16 %v44
  %v245 = vunpack.c.l.b16 %v45
  %v246 = vunpack.c.l.b16 %v46
  %v247 = vunpack.c.l.b16 %v47
  %v248 = vunpack.c.l.b16 %v48
  %v249 = vunpack.c.l.b16 %v49
  %v250 = vunpack.c.l.b16 %v50
  %v251 = vunpack.c.l.b16 %v51
  %v252 = vunpack.c.l.b16 %v52
  %v253 = vunpack.c.l.b16 %v53
  %v254 = vunpack.c.l.b16 %v54
  %v255 = vunpack.c.l.b16 %v55
  %v256 = vunpack.c.l.b16 %v56
  %v257 = vunpack.c.l.b16 %v57
  %v258 = vunpack.c.l.b16 %v58
  %v259 = vunpack.c.l.b16 %v59
  %v260 = vunpack.c.l.b16 %v60
  %v261 = vunpack.c.l.b16 %v61
  %v262 = vunpack.c.l.b16 %v62
  %v263 = vunpack.c.l.b16 %v63
  %v264 = vunpack.c.l.b16 %v64
  %v265 = vunpack.c.l.b16 %v65
  %v266 = vunpack.c.l.b16 %v66
  %v267 = vunpack.c.l.b16 %v67
  %v268 = vunpack.c.l.b16 %v68
  %v269 = vunpack.c.l.b16 %v69
  %v270 = vunpack.c.l.b16 %v70
  %v271 = vunpack.c.l.b16 %v71
  %v272 = vunpack.c.l.b16 %v72
  %v273 = vunpack.c.l.b16 %v73
  %v274 = vunpack.c.l.b16 %v74
  %v275 = vunpack.c.l.b16 %v75
  %v276 = vunpack.c.l.b16 %v76
  %v277 = vunpack.c.l.b16 %v77
  %v278 = vunpack.c.l.b16 %v78
  %v279 = vunpack.c.l.b16 %v79
  %v280 = vunpack.c.l.b16 %v80
  %v281 = vunpack.c.l.b16 %v81
  %v282 = vunpack.c.l.b16 %v82
  %v283 = vunpack.c.l.b16 %v83
  %v284 = vunpack.c.l.b16 %v84
  %v285 = vunpack.c.l.b16 %v85
  %v286 = vunpack.c.l.b16 %v86
  %v287 = vunpack.c.l.b16 %v87
  %v288 = vunpack.c.l.b16 %v88
  %v289 = vunpack.c.l.b16 %v89
  %v290 = vunpack.c.l.b16 %v90
  %v291 = vunpack.c.l.b16 %v91
  %v292 = vunpack.c.l.b16 %v92
  %v293 = vunpack.c.l.b16 %v93
  %v294 = vunpack.c.l.b16 %v94
  %v295 = vunpack.c.l.b16 %v95
  %v296 = vunpack.c.l.b16 %v96
  %v297 = vunpack.c.l.b16 %v97
  %v298 = vunpack.c.l.b16 %v98
  %v299 = vunpack.c.l.b16 %v99
  %v300 = vunpack.c.l.b16 %v100
  %v301 = vunpack.c.l.b16 %v101
  %v302 = vunpack.c.l.b16 %v102
  %v303 = vunpack.c.l.b16 %v103
  %v304 = vunpack.c.l.b16 %v104
  %v305 = vunpack.c.l.b16 %v105
  %v306 = vunpack.c.l.b16 %v106
  %v307 = vunpack.c.l.b16 %v107
  %v308 = vunpack.c.l.b16 %v108
  %v309 = vunpack.c.l.b16 %v109
  %v310 = vunpack.c.l.b16 %v110
  %v311 = vunpack.c.l.b16 %v111
  %v312 = vunpack.c.l.b16 %v112
  %v313 = vunpack.c.l.b16 %v113
  %v314 = vunpack.c.l.b16 %v114
  %v315 = vunpack.c.l.b16 %v115
  %v316 = vunpack.c.l.b16 %v116
  %v317 = vunpack.c.l.b16 %v117
  %v318 = vunpack.c.l.b16 %v118
  %v319 = vunpack.c.l.b16 %v119
  %v320 = vunpack.c.l.b16 %v120
  %v321 = vunpack.c.l.b16 %v121
  %v322 = vunpack.c.l.b16 %v122
  %v323 = vunpack.c.l.b16 %v123
  %v324 = vunpack.c.l.b16 %v124
  %v325 = vunpack.c.l.b16 %v125
  %v326 = vunpack.c.l.b16 %v126
  %v327 = vunpack.c.l.b16 %v127
  %v328 = vunpack.c.l.b16 %v128
  %v329 = vunpack.c.l.b16 %v129
  %v330 = vpack.c.b16 %v233, %v232
  %v331 = vpack.c.b16 %v235, %v234
  %v332 = vpack.c.b16 %v237, %v236
  %v333 = vpack.c.b16 %v239, %v238
  %v334 = vpack.c.b16 %v241, %v240
  %v335 = vpack.c.b16 %v243, %v242
  %v336 = vpack.c.b16 %v245, %v244
  %v337 = vpack.c.b16 %v247, %v246
  %v338 = vpack.c.b16 %v249, %v248
  %v339 = vpack.c.b16 %v251, %v250
  %v340 = vpack.c.b16 %v253, %v252
  %v341 = vpack.c.b16 %v255, %v254
  %v342 = vpack.c.b16 %v257, %v256
  %v343 = vpack.c.b16 %v259, %v258
  %v344 = vpack.c.b16 %v261, %v260
  %v345 = vpack.c.b16 %v263, %v262
  %v346 = vpack.c.b16 %v265, %v264
  %v347 = vpack.c.b16 %v267, %v266
  %v348 = vpack.c.b16 %v269, %v268
  %v349 = vpack.c.b16 %v271, %v270
  %v350 = vpack.c.b16 %v273, %v272
  %v351 = vpack.c.b16 %v275, %v274
  %v352 = vpack.c.b16 %v277, %v276
  %v353 = vpack.c.b16 %v279, %v278
  %v354 = vpack.c.b16 %v281, %v280
  %v355 = vpack.c.b16 %v283, %v282
  %v356 = vpack.c.b16 %v285, %v284
  %v357 = vpack.c.b16 %v287, %v286
  %v358 = vpack.c.b16 %v289, %v288
  %v359 = vpack.c.b16 %v291, %v290
  %v360 = vpack.c.b16 %v293, %v292
  %v361 = vpack.c.b16 %v295, %v294
  %v362 = vpack.c.b16 %v297, %v296
  %v363 = vpack.c.b16 %v299, %v298
  %v364 = vpack.c.b16 %v301, %v300
  %v365 = vpack.c.b16 %v303, %v302
  %v366 = vpack.c.b16 %v305, %v304
  %v367 = vpack.c.b16 %v307, %v306
  %v368 = vpack.c.b16 %v309, %v308
  %v369 = vpack.c.b16 %v311, %v310
  %v370 = vpack.c.b16 %v313, %v312
  %v371 = vpack.c.b16 %v315, %v314
  %v372 = vpack.c.b16 %v317, %v316
  %v373 = vpack.c.b16 %v319, %v318
  %v374 = vpack.c.b16 %v321, %v320
  %v375 = vpack.c.b16 %v323, %v322
  %v376 = vpack.c.b16 %v325, %v324
  %v377 = vpack.c.b16 %v327, %v326
  %v378 = vpack.c.b16 %v329, %v328
  %vm428 = vcmask 130048
  %v430 = vsel %vm428, %v31, 0
  %432 = vmatpush.bf16.msra.mxu0 %v337
  %433 = vmatpush.bf16.msra.mxu0 %v336
  %434 = vmatpush.bf16.msra.mxu0 %v335
  %435 = vmatpush.bf16.msra.mxu0 %v334
  %436 = vmatpush.bf16.msra.mxu0 %v333
  %437 = vmatpush.bf16.msra.mxu0 %v332
  %438 = vmatpush.bf16.msra.mxu0 %v331
  %439 = vmatpush.bf16.msra.mxu0 %v330
  %440 = vmatmul.bf16.gmra.mxu0 %v25
  %v441 = vpop.f32.mrf.mxu0
  %v442 = vadd.f32 %v132, %v441
  %v443 = vpop.f32.mrf.mxu0
  %444 = vdwg.mxu0
  %445 = vmatpush.bf16.msra.mxu0 %v345
  %446 = vmatpush.bf16.msra.mxu0 %v344
  %447 = vmatpush.bf16.msra.mxu0 %v343
  %448 = vmatpush.bf16.msra.mxu0 %v342
  %449 = vmatpush.bf16.msra.mxu0 %v341
  %450 = vmatpush.bf16.msra.mxu0 %v340
  %451 = vmatpush.bf16.msra.mxu0 %v339
  %452 = vmatpush.bf16.msra.mxu0 %v338
  %453 = vmatmul.bf16.gmra.mxu0 %v26
  %v454 = vpop.f32.mrf.mxu0
  %v455 = vadd.f32 %v442, %v454
  %v456 = vpop.f32.mrf.mxu0
  %457 = vdwg.mxu0
  %458 = vmatpush.bf16.msra.mxu0 %v353
  %459 = vmatpush.bf16.msra.mxu0 %v352
  %460 = vmatpush.bf16.msra.mxu0 %v351
  %461 = vmatpush.bf16.msra.mxu0 %v350
  %462 = vmatpush.bf16.msra.mxu0 %v349
  %463 = vmatpush.bf16.msra.mxu0 %v348
  %464 = vmatpush.bf16.msra.mxu0 %v347
  %465 = vmatpush.bf16.msra.mxu0 %v346
  %466 = vmatmul.bf16.gmra.mxu0 %v27
  %v467 = vpop.f32.mrf.mxu0
  %v468 = vadd.f32 %v455, %v467
  %v469 = vpop.f32.mrf.mxu0
  %470 = vdwg.mxu0
  %471 = vmatpush.bf16.msra.mxu0 %v361
  %472 = vmatpush.bf16.msra.mxu0 %v360
  %473 = vmatpush.bf16.msra.mxu0 %v359
  %474 = vmatpush.bf16.msra.mxu0 %v358
  %475 = vmatpush.bf16.msra.mxu0 %v357
  %476 = vmatpush.bf16.msra.mxu0 %v356
  %477 = vmatpush.bf16.msra.mxu0 %v355
  %478 = vmatpush.bf16.msra.mxu0 %v354
  %479 = vmatmul.bf16.gmra.mxu0 %v28
  %v480 = vpop.f32.mrf.mxu0
  %v481 = vadd.f32 %v468, %v480
  %v482 = vpop.f32.mrf.mxu0
  %483 = vdwg.mxu0
  %484 = vmatpush.bf16.msra.mxu0 %v369
  %485 = vmatpush.bf16.msra.mxu0 %v368
  %486 = vmatpush.bf16.msra.mxu0 %v367
  %487 = vmatpush.bf16.msra.mxu0 %v366
  %488 = vmatpush.bf16.msra.mxu0 %v365
  %489 = vmatpush.bf16.msra.mxu0 %v364
  %490 = vmatpush.bf16.msra.mxu0 %v363
  %491 = vmatpush.bf16.msra.mxu0 %v362
  %492 = vmatmul.bf16.gmra.mxu0 %v29
  %v493 = vpop.f32.mrf.mxu0
  %v494 = vadd.f32 %v481, %v493
  %v495 = vpop.f32.mrf.mxu0
  %496 = vdwg.mxu0
  %497 = vmatpush.bf16.msra.mxu0 %v377
  %498 = vmatpush.bf16.msra.mxu0 %v376
  %499 = vmatpush.bf16.msra.mxu0 %v375
  %500 = vmatpush.bf16.msra.mxu0 %v374
  %501 = vmatpush.bf16.msra.mxu0 %v373
  %502 = vmatpush.bf16.msra.mxu0 %v372
  %503 = vmatpush.bf16.msra.mxu0 %v371
  %504 = vmatpush.bf16.msra.mxu0 %v370
  %505 = vmatmul.bf16.gmra.mxu0 %v30
  %v506 = vpop.f32.mrf.mxu0
  %v507 = vadd.f32 %v494, %v506
  %v508 = vpop.f32.mrf.mxu0
  %509 = vdwg.mxu0
  %510 = vmatpush.bf16.msra.mxu0 0
  %511 = vmatpush.bf16.msra.mxu0 0
  %512 = vmatpush.bf16.msra.mxu0 0
  %513 = vmatpush.bf16.msra.mxu0 0
  %514 = vmatpush.bf16.msra.mxu0 0
  %515 = vmatpush.bf16.msra.mxu0 0
  %516 = vmatpush.bf16.msra.mxu0 0
  %517 = vmatpush.bf16.msra.mxu0 %v378
  %518 = vmatmul.bf16.gmra.mxu0 %v430
  %v519 = vpop.f32.mrf.mxu0
  %v520 = vadd.f32 %v507, %v519
  %v521 = vpop.f32.mrf.mxu0
  %522 = vdwg.mxu0
  %v523 = vmax.f32 %v520, 0.0
  %v524 = vld [vmem:[%s3] sm:$0x1]
  %v526 = vperm.slane %v524, 0
  %v528 = vadd.f32 %v523, %v526
  %vm529 = vcmask 261120
  %v530 = vsel %vm529, %v528, -inf
  %531 = vmax.xlane.f32.xlu0 %v530
  %v532 = vpop.xlane.xlu0 %531
  %v533 = vsub.f32 %v528, %v532
  %v534 = vmul.f32 %v533, 1.442695
  %v535 = vpow.pop %v534
  %v536 = vsel %vm529, %v535, 0.0
  %537 = vadd.xlane.f32.xlu0 %v536
  %v538 = vpop.xlane.xlu0 %537
  %v539 = vlog2.pop %v538
  %v540 = vmul.f32 %v539, 0.6931472
  %v541 = vadd.f32 %v540, %v532
  %v542 = vsub.f32 %v528, %v541
  %543 = vst.msk [vmem:[%s4] sm:$0xff] %vm529, %v542
  // Predicated region
  $region18: #{fcnet_forward.1} parent=0 // pred_check
    _
  $region19: #{fcnet_forward.1} parent=0 // pred_check_branch
    %545 = sbr.rel (0) target = $region21
  $region20: #{fcnet_forward.1} parent=0 // pred_region
    _
  $region21: #{fcnet_forward.1} parent=0 // pred_fallthru
    _
  // Predicated region
  $region22: #{fcnet_forward.1} parent=0 // pred_check
    _
  $region23: #{fcnet_forward.1} parent=0 // pred_check_branch
    %547 = sbr.rel (0) target = $region25
  $region24: #{fcnet_forward.1} parent=0 // pred_region
    _
  $region25: #{fcnet_forward.1} parent=0 // pred_fallthru
    _

</llo_original>
